<compile_context>
chip_gen: v7x
topology: tpu7x:2x2x1
jax: 0.10.0
libtpu: 0.0.40
codegen_flags: <defaults>
</compile_context>

<pallas_src>
import jax
import jax.numpy as jnp
from jax.experimental import pallas as pl
from jax.experimental.pallas import tpu as pltpu

T_CHUNK = 8  # timesteps per grid step of the recurrence kernel


def _round_up(x, m):
    return (x + m - 1) // m * m


def _pick_tile(n):
    # n is always a multiple of 128 here.
    for t in (512, 256, 128):
        if n % t == 0:
            return t
    return n


# ---------------------------------------------------------------------------
# Grid-parallel matmul + bias kernel:  out = x @ w + b
# Used for both the (hoisted) input projection and the (deferred) output projection.
# ---------------------------------------------------------------------------
def _matmul_bias_kernel(x_ref, w_ref, b_ref, o_ref):
    o_ref[...] = (
        jnp.dot(x_ref[...], w_ref[...], preferred_element_type=jnp.float32)
        + b_ref[...]
    ).astype(o_ref.dtype)


def _matmul_bias(x, w, b, *, row_tile, n_tile):
    R, K = x.shape
    _, N = w.shape
    return pl.pallas_call(
        _matmul_bias_kernel,
        out_shape=jax.ShapeDtypeStruct((R, N), jnp.float32),
        grid=(R // row_tile, N // n_tile),
        in_specs=[
            pl.BlockSpec((row_tile, K), lambda i, j: (i, 0)),
            pl.BlockSpec((K, n_tile), lambda i, j: (0, j)),
            pl.BlockSpec((1, n_tile), lambda i, j: (0, j)),
        ],
        out_specs=pl.BlockSpec((row_tile, n_tile), lambda i, j: (i, j)),
        compiler_params=pltpu.CompilerParams(
            dimension_semantics=("parallel", "parallel")),
    )(x, w, b)


# ---------------------------------------------------------------------------
# Serial recurrence kernel: h_t = tanh(xproj_t + h_{t-1} @ Whh)
# xproj already contains  x_t @ Wxh + bh.
# Processes a chunk of timesteps per grid step; hidden state persists in VMEM scratch.
# ---------------------------------------------------------------------------
def _recurrence_kernel(xproj_ref, whh_ref, h_out_ref, h_scratch):
    @pl.when(pl.program_id(0) == 0)
    def _():
        h_scratch[...] = jnp.zeros_like(h_scratch)

    whh = whh_ref[...]                       # (hidden_p, hidden_p), resident
    h = h_scratch[...]                       # (batch_p, hidden_p)

    # Statically unrolled inner loop over the time chunk (trip count is a
    # compile-time constant, so indices are static -> plain VMEM slab stores).
    t_chunk = xproj_ref.shape[0]
    for i in range(t_chunk):
        h = jnp.tanh(
            xproj_ref[i]
            + jnp.dot(h, whh, preferred_element_type=jnp.float32))
        h_out_ref[i] = h.astype(h_out_ref.dtype)

    h_scratch[...] = h


# ---------------------------------------------------------------------------
# Wrapper: full CustomRNN forward.
# ---------------------------------------------------------------------------
def custom_rnn_forward(X, embedding_matrix, Wxh, Whh, bh, Why, by, *, t_chunk=T_CHUNK):
    """X: (batch, seq) int32 token ids. Returns (batch, seq, vocab) float32."""
    batch, seq = X.shape
    vocab, emb = embedding_matrix.shape
    hidden = Whh.shape[0]

    # Pad to hardware tiles (zero padding is exact for this recurrence).
    batch_p = _round_up(batch, 8)
    seq_p = _round_up(seq, t_chunk)
    emb_p = _round_up(emb, 128)
    hidden_p = _round_up(hidden, 128)
    vocab_p = _round_up(vocab, 128)

    f32 = jnp.float32
    E_p = jnp.pad(embedding_matrix.astype(f32), ((0, 0), (0, emb_p - emb)))
    Wxh_p = jnp.pad(Wxh.astype(f32), ((0, emb_p - emb), (0, hidden_p - hidden)))
    Whh_p = jnp.pad(Whh.astype(f32), ((0, hidden_p - hidden), (0, hidden_p - hidden)))
    bh_p = jnp.pad(bh.astype(f32), (0, hidden_p - hidden)).reshape(1, hidden_p)
    WhyT_p = jnp.pad(Why.T.astype(f32), ((0, hidden_p - hidden), (0, vocab_p - vocab)))
    by_p = jnp.pad(by.astype(f32), (0, vocab_p - vocab)).reshape(1, vocab_p)

    # Time-major embedding gather (pad token ids with 0; padded rows/steps are sliced off).
    # TODO(synk): embedding-row gather stays in the wrapper (jnp.take); a true in-kernel
    # gather would need manual per-row DMA which is not worth it at these sizes.
    ids = jnp.pad(X.astype(jnp.int32).T, ((0, seq_p - seq), (0, batch_p - batch)))
    emb_tbe = jnp.take(E_p, ids, axis=0)                 # (seq_p, batch_p, emb_p)

    R = seq_p * batch_p
    row_tile = t_chunk * batch_p                         # always divides R

    # 1) Hoisted input projection: one big parallel matmul, bh folded in.
    x_proj = _matmul_bias(emb_tbe.reshape(R, emb_p), Wxh_p, bh_p,
                          row_tile=row_tile, n_tile=_pick_tile(hidden_p))
    x_proj = x_proj.reshape(seq_p, batch_p, hidden_p)

    # 2) Serial recurrence, chunked over time; only a hidden-sized matmul per step.
    H = pl.pallas_call(
        _recurrence_kernel,
        out_shape=jax.ShapeDtypeStruct((seq_p, batch_p, hidden_p), jnp.float32),
        grid=(seq_p // t_chunk,),
        in_specs=[
            pl.BlockSpec((t_chunk, batch_p, hidden_p), lambda c: (c, 0, 0)),
            pl.BlockSpec((hidden_p, hidden_p), lambda c: (0, 0)),
        ],
        out_specs=pl.BlockSpec((t_chunk, batch_p, hidden_p), lambda c: (c, 0, 0)),
        scratch_shapes=[pltpu.VMEM((batch_p, hidden_p), jnp.float32)],
        compiler_params=pltpu.CompilerParams(
            dimension_semantics=("arbitrary",)),         # true recurrence: sequential
    )(x_proj, Whh_p)

    # 3) Deferred output projection: one big parallel matmul, by folded in.
    Y = _matmul_bias(H.reshape(R, hidden_p), WhyT_p, by_p,
                     row_tile=row_tile, n_tile=_pick_tile(vocab_p))
    Y = Y.reshape(seq_p, batch_p, vocab_p)[:seq, :batch, :vocab]
    return jnp.transpose(Y, (1, 0, 2))                   # (batch, seq, vocab)


# ---------------------------------------------------------------------------
# Pure-JAX reference (mirrors the PyTorch module's forward).
# ---------------------------------------------------------------------------
def _reference_forward(X, embedding_matrix, Wxh, Whh, bh, Why, by):
    batch, seq = X.shape
    hidden = Whh.shape[0]
    emb = jnp.take(embedding_matrix, X, axis=0)
    ht = jnp.zeros((batch, hidden), jnp.float32)
    outs = []
    for t in range(seq):
        xt = emb[:, t, :]
        ht = jnp.tanh(xt @ Wxh + ht @ Whh + bh)
        outs.append(ht @ Why.T + by)
    return jnp.stack(outs, axis=1)


if __name__ == "__main__":
    batch, seq = 4, 8
    vocab, emb_dim, hidden = 64, 32, 32

    key = jax.random.PRNGKey(0)
    k_emb, k_wxh, k_whh, k_why, k_x = jax.random.split(key, 5)

    embedding_matrix = jax.random.normal(k_emb, (vocab, emb_dim), jnp.float32)
    Wxh = jax.random.normal(k_wxh, (emb_dim, hidden), jnp.float32) * 0.01
    Whh = jax.random.normal(k_whh, (hidden, hidden), jnp.float32) * 0.01
    bh = jnp.zeros((hidden,), jnp.float32)
    Why = jax.random.normal(k_why, (vocab, hidden), jnp.float32) * 0.01
    by = jnp.zeros((vocab,), jnp.float32)

    X = jax.random.randint(k_x, (batch, seq), 0, vocab, dtype=jnp.int32)

    out = custom_rnn_forward(X, embedding_matrix, Wxh, Whh, bh, Why, by)
    out = jax.block_until_ready(out)

    ref = _reference_forward(X, embedding_matrix, Wxh, Whh, bh, Why, by)
    assert out.shape == (batch, seq, vocab)
    assert jnp.allclose(out, ref, atol=1e-4, rtol=1e-4), \
        float(jnp.max(jnp.abs(out - ref)))

    print("KERNEL_OK")
</pallas_src>

<mosaic_0001>
module attributes {stable_mosaic.version = 11 : i64} {
  func.func @_matmul_bias_kernel(%arg0: i32, %arg1: i32, %arg2: memref<64x128xf32, #tpu.memory_space<vmem>>, %arg3: memref<128x128xf32, #tpu.memory_space<vmem>>, %arg4: memref<1x128xf32, #tpu.memory_space<vmem>>, %arg5: memref<64x128xf32, #tpu.memory_space<vmem>>) attributes {dimension_semantics = [#tpu.dimension_semantics<parallel>, #tpu.dimension_semantics<parallel>], iteration_bounds = array<i64: 1, 1>, scalar_prefetch = 0 : i64, scratch_operands = 0 : i64, tpu.core_type = #tpu.core_type<tc>, window_params = [{transform_indices = @transform_0, window_bounds = array<i64: 64, 128>}, {transform_indices = @transform_1, window_bounds = array<i64: 128, 128>}, {transform_indices = @transform_2, window_bounds = array<i64: 1, 128>}, {transform_indices = @transform_3, window_bounds = array<i64: 64, 128>}]} {
    %c0 = arith.constant 0 : index
    %c0_0 = arith.constant 0 : index
    %0 = vector.load %arg2[%c0, %c0_0] : memref<64x128xf32, #tpu.memory_space<vmem>>, vector<64x128xf32>
    %c0_1 = arith.constant 0 : index
    %c0_2 = arith.constant 0 : index
    %1 = vector.load %arg3[%c0_1, %c0_2] : memref<128x128xf32, #tpu.memory_space<vmem>>, vector<128x128xf32>
    %cst = arith.constant dense<0.000000e+00> : vector<64x128xf32>
    %2 = tpu.matmul %0, %1, %cst {dimension_numbers = #tpu.dot_dimension_numbers<[1], [0], [0], [1], [0, 0, 1, 1], [], []>} : vector<64x128xf32>, vector<128x128xf32>, vector<64x128xf32> -> vector<64x128xf32>
    %c0_3 = arith.constant 0 : index
    %c0_4 = arith.constant 0 : index
    %3 = vector.load %arg4[%c0_3, %c0_4] : memref<1x128xf32, #tpu.memory_space<vmem>>, vector<1x128xf32>
    %4 = vector.broadcast %3 : vector<1x128xf32> to vector<64x128xf32>
    %5 = arith.addf %2, %4 : vector<64x128xf32>
    %c0_5 = arith.constant 0 : index
    %c0_6 = arith.constant 0 : index
    %6 = vector.load %arg5[%c0_5, %c0_6] : memref<64x128xf32, #tpu.memory_space<vmem>>, vector<64x128xf32>
    tpu.vector_store %arg5[%c0_5, %c0_6], %5 {strides = array<i32>} : memref<64x128xf32, #tpu.memory_space<vmem>>, vector<64x128xf32>,
    return
  }
  func.func @transform_0(%arg0: i32, %arg1: i32) -> (i32, i32) {
    %c0_i32 = arith.constant 0 : i32
    %c0_i32_0 = arith.constant 0 : i32
    return %arg0, %c0_i32 : i32, i32
  }
  func.func @transform_1(%arg0: i32, %arg1: i32) -> (i32, i32) {
    %c0_i32 = arith.constant 0 : i32
    %c0_i32_0 = arith.constant 0 : i32
    return %c0_i32, %arg1 : i32, i32
  }
  func.func @transform_2(%arg0: i32, %arg1: i32) -> (i32, i32) {
    %c0_i32 = arith.constant 0 : i32
    %c0_i32_0 = arith.constant 0 : i32
    return %c0_i32, %arg1 : i32, i32
  }
  func.func @transform_3(%arg0: i32, %arg1: i32) -> (i32, i32) {
    %c0_i32 = arith.constant 0 : i32
    return %arg0, %arg1 : i32, i32
  }
}

</mosaic_0001>

<llo_original>
// kernel: tpu_custom_call.1
$region0: #{tpu_custom_call.1}
  #allocation0 [shape = 'u32[]', space=smem, size = 0x4, offset = 0x4, fixed_abs, tag = 'smem constant byte address 0x4 - core index']
  #allocation1 [shape = 'u32[144,128]{1,0:T(1,128)}', space=vmem, size = 0x12000, scoped, tag = 'internal scratch']
  %s0 = inlined_call_operand.hbm [shape: f32[64,128], index: 0, kind: input, shape index: {}]
  %s1 = inlined_call_operand.hbm [shape: f32[128,128], index: 1, kind: input, shape index: {}]
  %s2 = inlined_call_operand.vmem [shape: f32[1,128], index: 2, kind: input, shape index: {}]
  %s3 = inlined_call_operand.hbm [shape: f32[64,128], index: 3, kind: output, shape index: {}]
  %s4 = sld [smem:[#allocation0]]
  $region30: #{tpu_custom_call.1} parent=0
    _
  %s6 = ssub.s32 1, %s4
  %s7 = scalar_select 0, %s6, %s4
  $region1: #{tpu_custom_call.1} parent=0
    #allocation2 [shape = 'u8[32768]{0}', space=vmem, size = 0x8000, scoped, tag = 'input window, operand 0, single buffered']
    #allocation3 [shape = 's32[1]{0}', space=sflag, size = 0x4, scoped, tag = 'scoped memory for tpu_custom_call.1']
    #allocation4 [shape = 's32[1]{0}', space=sflag, size = 0x4, scoped, tag = 'scoped memory for tpu_custom_call.1']
    #allocation5 [shape = 'u8[65536]{0}', space=vmem, size = 0x10000, scoped, tag = 'input window, operand 1, single buffered']
    #allocation6 [shape = 's32[1]{0}', space=sflag, size = 0x4, scoped, tag = 'scoped memory for tpu_custom_call.1']
    #allocation7 [shape = 'u8[32768]{0}', space=vmem, size = 0x8000, scoped, tag = 'output window, operand 0, single buffered']
    %8 = vsyncpa [#allocation3], 0
    %9 = vsyncpa [#allocation6], 0
    %10 = vsyncpa [#allocation4], 0
    // Predicated region
    $region2: #{tpu_custom_call.1} parent=1 // pred_check
      _
    $region3: #{tpu_custom_call.1} parent=1 // pred_check_branch
      %12 = sbr.rel (0) target = $region5
    $region4: #{tpu_custom_call.1} parent=1 // pred_region
      %s14 = ssub.s32 1024, 1024
      %15 = vsyncadd [#allocation3], %s14
      %s16 = sshll.u32 [#allocation2], 4
      %s17 = int_to_ptr.vmem [resolvable:$true] %s16
      %22 = dma.hbm_to_vmem [thread:$0]  %s0, 1024, %s17, [#allocation3], 128, 128, 8
    $region5: #{tpu_custom_call.1} parent=1 // pred_fallthru
      _
    // Predicated region
    $region6: #{tpu_custom_call.1} parent=1 // pred_check
      _
    $region7: #{tpu_custom_call.1} parent=1 // pred_check_branch
      %24 = sbr.rel (0) target = $region9
    $region8: #{tpu_custom_call.1} parent=1 // pred_region
      %s26 = ssub.s32 2048, 2048
      %27 = vsyncadd [#allocation6], %s26
      %s28 = sshll.u32 [#allocation5], 4
      %s29 = int_to_ptr.vmem [resolvable:$true] %s28
      %34 = dma.hbm_to_vmem [thread:$0]  %s1, 2048, %s29, [#allocation6], 128, 128, 8
    $region9: #{tpu_custom_call.1} parent=1 // pred_fallthru
      _
    // Predicated region
    $region10: #{tpu_custom_call.1} parent=1 // pred_check
      _
    $region11: #{tpu_custom_call.1} parent=1 // pred_check_branch
      %36 = sbr.rel (0) target = $region13
    $region12: #{tpu_custom_call.1} parent=1 // pred_region
      _
    $region13: #{tpu_custom_call.1} parent=1 // pred_fallthru
      _
    // Predicated region
    $region14: #{tpu_custom_call.1} parent=1 // pred_check
      _
    $region15: #{tpu_custom_call.1} parent=1 // pred_check_branch
      %38 = sbr.rel (0) target = $region17
    $region16: #{tpu_custom_call.1} parent=1 // pred_region
      %39 = dma.done [#allocation3], 1024
    $region17: #{tpu_custom_call.1} parent=1 // pred_fallthru
      _
    // Predicated region
    $region18: #{tpu_custom_call.1} parent=1 // pred_check
      _
    $region19: #{tpu_custom_call.1} parent=1 // pred_check_branch
      %41 = sbr.rel (0) target = $region21
    $region20: #{tpu_custom_call.1} parent=1 // pred_region
      %42 = dma.done [#allocation6], 2048
    $region21: #{tpu_custom_call.1} parent=1 // pred_fallthru
      _
    %v43 = vld [vmem:[#allocation2] sm:$0xff]
    %v44 = vld [vmem:[#allocation2 + $0x8] sm:$0xff]
    %v45 = vld [vmem:[#allocation2 + $0x10] sm:$0xff]
    %v46 = vld [vmem:[#allocation2 + $0x18] sm:$0xff]
    %v47 = vld [vmem:[#allocation2 + $0x20] sm:$0xff]
    %v48 = vld [vmem:[#allocation2 + $0x28] sm:$0xff]
    %v49 = vld [vmem:[#allocation2 + $0x30] sm:$0xff]
    %v50 = vld [vmem:[#allocation2 + $0x38] sm:$0xff]
    %v51 = vld [vmem:[#allocation5] sm:$0xff]
    %v52 = vld [vmem:[#allocation5 + $0x8] sm:$0xff]
    %v53 = vld [vmem:[#allocation5 + $0x10] sm:$0xff]
    %v54 = vld [vmem:[#allocation5 + $0x18] sm:$0xff]
    %v55 = vld [vmem:[#allocation5 + $0x20] sm:$0xff]
    %v56 = vld [vmem:[#allocation5 + $0x28] sm:$0xff]
    %v57 = vld [vmem:[#allocation5 + $0x30] sm:$0xff]
    %v58 = vld [vmem:[#allocation5 + $0x38] sm:$0xff]
    %v59 = vld [vmem:[#allocation5 + $0x40] sm:$0xff]
    %v60 = vld [vmem:[#allocation5 + $0x48] sm:$0xff]
    %v61 = vld [vmem:[#allocation5 + $0x50] sm:$0xff]
    %v62 = vld [vmem:[#allocation5 + $0x58] sm:$0xff]
    %v63 = vld [vmem:[#allocation5 + $0x60] sm:$0xff]
    %v64 = vld [vmem:[#allocation5 + $0x68] sm:$0xff]
    %v65 = vld [vmem:[#allocation5 + $0x70] sm:$0xff]
    %v66 = vld [vmem:[#allocation5 + $0x78] sm:$0xff]
    %v67 = vld [vmem:[%s2] sm:$0x1]
    %v69 = vlaneseq
    %v70 = vshrl.u32 %v69, 7
    %v71 = vsub.s32 0, %v70
    %v72 = vrot.slane %v67, %v71
    %74 = vmatprep.subr.mxu0 0.0
    %75 = vmatpush1.msra.mxu0 %v51
    %76 = vmatprep.subr.mxu0 0.0
    %77 = vmatpush1.msra.mxu0 %v52
    %78 = vmatprep.subr.mxu0 0.0
    %79 = vmatpush1.msra.mxu0 %v53
    %80 = vmatprep.subr.mxu0 0.0
    %81 = vmatpush1.msra.mxu0 %v54
    %82 = vmatprep.subr.mxu0 0.0
    %83 = vmatpush1.msra.mxu0 %v55
    %84 = vmatprep.subr.mxu0 0.0
    %85 = vmatpush1.msra.mxu0 %v56
    %86 = vmatprep.subr.mxu0 0.0
    %87 = vmatpush1.msra.mxu0 %v57
    %88 = vmatprep.subr.mxu0 0.0
    %89 = vmatpush1.msra.mxu0 %v58
    %90 = vmatprep.subr.mxu0 0.0
    %91 = vmatpush1.msra.mxu0 %v59
    %92 = vmatprep.subr.mxu0 0.0
    %93 = vmatpush1.msra.mxu0 %v60
    %94 = vmatprep.subr.mxu0 0.0
    %95 = vmatpush1.msra.mxu0 %v61
    %96 = vmatprep.subr.mxu0 0.0
    %97 = vmatpush1.msra.mxu0 %v62
    %98 = vmatprep.subr.mxu0 0.0
    %99 = vmatpush1.msra.mxu0 %v63
    %100 = vmatprep.subr.mxu0 0.0
    %101 = vmatpush1.msra.mxu0 %v64
    %102 = vmatprep.subr.mxu0 0.0
    %103 = vmatpush1.msra.mxu0 %v65
    %104 = vmatprep.subr.mxu0 0.0
    %105 = vmatpush1.msra.mxu0 %v66
    %106 = vmatprep.subr.mxu0 0.0
    %107 = vmatpush1.msra.mxu0 0.0
    %108 = vmatprep.subr.mxu0 0.0
    %109 = vmatpush1.msra.mxu0 0.0
    %110 = vmatprep.subr.mxu0 0.0
    %111 = vmatpush1.msra.mxu0 0.0
    %112 = vmatprep.subr.mxu0 0.0
    %113 = vmatpush1.msra.mxu0 0.0
    %114 = vmatprep.subr.mxu0 0.0
    %115 = vmatpush1.msra.mxu0 0.0
    %116 = vmatprep.subr.mxu0 0.0
    %117 = vmatpush1.msra.mxu0 0.0
    %118 = vmatprep.subr.mxu0 0.0
    %119 = vmatpush1.msra.mxu0 0.0
    %120 = vmatprep.subr.mxu0 0.0
    %121 = vmatpush1.msra.mxu0 0.0
    %122 = vmatprep.subr.mxu0 0.0
    %123 = vmatpush1.msra.mxu0 0.0
    %124 = vmatprep.subr.mxu0 0.0
    %125 = vmatpush1.msra.mxu0 0.0
    %126 = vmatprep.subr.mxu0 0.0
    %127 = vmatpush1.msra.mxu0 0.0
    %128 = vmatprep.subr.mxu0 0.0
    %129 = vmatpush1.msra.mxu0 0.0
    %130 = vmatprep.subr.mxu0 0.0
    %131 = vmatpush1.msra.mxu0 0.0
    %132 = vmatprep.subr.mxu0 0.0
    %133 = vmatpush1.msra.mxu0 0.0
    %134 = vmatprep.subr.mxu0 0.0
    %135 = vmatpush1.msra.mxu0 0.0
    %136 = vmatprep.subr.mxu0 0.0
    %137 = vmatpush1.msra.mxu0 0.0
    %138 = vmatprep.mubr.f32.mxu0 0.0
    %139 = vmatmul.mubr.f32.gmra.mrb[0].mxu0 %v43
    %v140 = vpop.f32.mrb[0].mxu0
    %v141 = vadd.f32 %v72, %v140
    %v142 = vpop.f32.mrb[0].mxu0
    %143 = vmatprep.mubr.f32.mxu0 0.0
    %144 = vmatmul.mubr.f32.gmra.mrb[0].mxu0 %v44
    %v145 = vpop.f32.mrb[0].mxu0
    %v146 = vadd.f32 %v72, %v145
    %v147 = vpop.f32.mrb[0].mxu0
    %148 = vmatprep.mubr.f32.mxu0 0.0
    %149 = vmatmul.mubr.f32.gmra.mrb[0].mxu0 %v45
    %v150 = vpop.f32.mrb[0].mxu0
    %v151 = vadd.f32 %v72, %v150
    %v152 = vpop.f32.mrb[0].mxu0
    %153 = vmatprep.mubr.f32.mxu0 0.0
    %154 = vmatmul.mubr.f32.gmra.mrb[0].mxu0 %v46
    %v155 = vpop.f32.mrb[0].mxu0
    %v156 = vadd.f32 %v72, %v155
    %v157 = vpop.f32.mrb[0].mxu0
    %158 = vmatprep.mubr.f32.mxu0 0.0
    %159 = vmatmul.mubr.f32.gmra.mrb[0].mxu0 %v47
    %v160 = vpop.f32.mrb[0].mxu0
    %v161 = vadd.f32 %v72, %v160
    %v162 = vpop.f32.mrb[0].mxu0
    %163 = vmatprep.mubr.f32.mxu0 0.0
    %164 = vmatmul.mubr.f32.gmra.mrb[0].mxu0 %v48
    %v165 = vpop.f32.mrb[0].mxu0
    %v166 = vadd.f32 %v72, %v165
    %v167 = vpop.f32.mrb[0].mxu0
    %168 = vmatprep.mubr.f32.mxu0 0.0
    %169 = vmatmul.mubr.f32.gmra.mrb[0].mxu0 %v49
    %v170 = vpop.f32.mrb[0].mxu0
    %v171 = vadd.f32 %v72, %v170
    %v172 = vpop.f32.mrb[0].mxu0
    %173 = vmatprep.mubr.f32.mxu0 0.0
    %174 = vmatmul.mubr.f32.gmra.mrb[0].mxu0 %v50
    %v175 = vpop.f32.mrb[0].mxu0
    %v176 = vadd.f32 %v72, %v175
    %v177 = vpop.f32.mrb[0].mxu0
    %178 = vdwg.mxu0
    %179 = vst [vmem:[#allocation7] sm:$0xff] %v141
    %180 = vst [vmem:[#allocation7 + $0x8] sm:$0xff] %v146
    %181 = vst [vmem:[#allocation7 + $0x10] sm:$0xff] %v151
    %182 = vst [vmem:[#allocation7 + $0x18] sm:$0xff] %v156
    %183 = vst [vmem:[#allocation7 + $0x20] sm:$0xff] %v161
    %184 = vst [vmem:[#allocation7 + $0x28] sm:$0xff] %v166
    %185 = vst [vmem:[#allocation7 + $0x30] sm:$0xff] %v171
    %186 = vst [vmem:[#allocation7 + $0x38] sm:$0xff] %v176
    // Predicated region
    $region22: #{tpu_custom_call.1} parent=1 // pred_check
      _
    $region23: #{tpu_custom_call.1} parent=1 // pred_check_branch
      %188 = sbr.rel (0) target = $region25
    $region24: #{tpu_custom_call.1} parent=1 // pred_region
      %s190 = ssub.s32 1024, 1024
      %191 = vsyncadd [#allocation4], %s190
      %s192 = sshll.u32 [#allocation7], 4
      %s193 = int_to_ptr.vmem [resolvable:$true] %s192
      %198 = dma.vmem_to_hbm [thread:$0]  %s193, 1024, %s3, [#allocation4], 128, 128, 8
    $region25: #{tpu_custom_call.1} parent=1 // pred_fallthru
      _
    // Predicated region
    $region26: #{tpu_custom_call.1} parent=1 // pred_check
      _
    $region27: #{tpu_custom_call.1} parent=1 // pred_check_branch
      %200 = sbr.rel (0) target = $region29
    $region28: #{tpu_custom_call.1} parent=1 // pred_region
      %201 = dma.done [#allocation4], 1024
    $region29: #{tpu_custom_call.1} parent=1 // pred_fallthru
      _
    %202 = vsyncpa [#allocation3], 1
    %203 = vsyncpa [#allocation6], 1
    %204 = vsyncpa [#allocation4], 1

</llo_original>
